<compile_context>
chip_gen: v7x
topology: tpu7x:2x2x1
jax: 0.10.0
libtpu: 0.0.40
codegen_flags: <defaults>
</compile_context>

<pallas_src>
import functools

import jax
import jax.numpy as jnp
from jax import lax
from jax.experimental import pallas as pl
from jax.experimental.pallas import tpu as pltpu


def _round_up(x, m):
    return (x + m - 1) // m * m


@functools.lru_cache(maxsize=1)
def _vmem_info():
    """Returns (vmem_budget_bytes, vmem_capacity_bytes) for this TPU."""
    cap = 64 * 1024 * 1024  # conservative fallback (v7x-sized VMEM)
    try:
        info = pltpu.get_tpu_info()
        cap = int(getattr(info, "vmem_capacity_bytes", cap)) or cap
    except Exception:
        pass
    # ~70% of physical VMEM: ~90 MiB on v5e/v6e (128 MiB), ~45 MiB on v7x
    # (64 MiB); headroom left for Mosaic internal scratch / pipeline slack.
    return max(int(cap * 0.70), 24 * 1024 * 1024), cap


def _choose_tiles(M, d_model, vocab, x_item, w_item, budget):
    """Pick (tm, tv, tk, vmem_used) so double-buffered tiles fit the budget."""
    tm = min(_round_up(M, 8), 512)           # MXU-filling row tile
    tv = min(_round_up(vocab, 128), 1024)    # lane-dense vocab tile
    tk = d_model                             # prefer un-tiled contraction

    def footprint(tm_, tv_, tk_):
        # double-buffered x / W / out tiles + f32 accumulator + argmax lane scratch
        return (2 * (tm_ * tk_ * x_item + tk_ * tv_ * w_item + tm_ * tv_ * 4)
                + tm_ * tv_ * 4 + 2 * tm_ * 128 * 4)

    # 1) shrink the vocab tile (only costs grid steps) down to 512 first
    while footprint(tm, tv, tk) > budget and tv > 512:
        tv = max(128, (tv // 2) // 128 * 128)
    # 2) tile the contraction (d_model) with an aligned divisor before
    #    collapsing tv/tm further (v7x: 64 MiB VMEM + large d_model)
    if footprint(tm, tv, tk) > budget:
        for cand in (2048, 1024, 512, 256, 128):
            if cand < d_model and d_model % cand == 0 and \
                    footprint(tm, tv, cand) <= budget:
                tk = cand
                break
    # 3) last resort: shrink vocab tile, then row tile
    while footprint(tm, tv, tk) > budget and tv > 128:
        tv = max(128, (tv // 2) // 128 * 128)
    while footprint(tm, tv, tk) > budget and tm > 8:
        tm = max(8, (tm // 2) // 8 * 8)
    return tm, tv, tk, footprint(tm, tv, tk)


# ---------------------------------------------------------------------------
# Kernel 1: plain unembedding (logits).  Grid = (A, B, K) with K (d_model)
# innermost reduction; (A, B) is (M, vocab) or (vocab, M) depending on which
# operand is cheaper to re-stream.
# ---------------------------------------------------------------------------
def _unembed_logits_kernel(x_ref, w_ref, o_ref, acc_ref):
    @pl.when(pl.program_id(2) == 0)
    def _():
        acc_ref[...] = jnp.zeros_like(acc_ref)

    acc_ref[...] += jnp.dot(x_ref[...], w_ref[...],
                            preferred_element_type=jnp.float32)
    o_ref[...] = acc_ref[...].astype(o_ref.dtype)


# ---------------------------------------------------------------------------
# Kernel 2: fused unembedding + argmax over vocab.
# Grid = (M tiles, vocab tiles, d_model tiles); vocab and d_model are
# reductions.  Logits never touch HBM.
# ---------------------------------------------------------------------------
def _make_unembed_argmax_kernel(vocab, tv):
    nsub = tv // 128
    mask_cols = (vocab % tv) != 0   # only the ragged last vocab tile needs it

    def kernel(x_ref, w_ref, idx_ref, acc_ref, lmax_ref, larg_ref):
        j = pl.program_id(1)        # vocab tile
        k = pl.program_id(2)        # d_model tile
        nj = pl.num_programs(1)
        nk = pl.num_programs(2)

        @pl.when(jnp.logical_and(j == 0, k == 0))
        def _():
            lmax_ref[...] = jnp.full_like(lmax_ref, -jnp.inf)
            larg_ref[...] = jnp.zeros_like(larg_ref)

        @pl.when(k == 0)
        def _():
            acc_ref[...] = jnp.zeros_like(acc_ref)

        acc_ref[...] += jnp.dot(x_ref[...], w_ref[...],
                                preferred_element_type=jnp.float32)

        @pl.when(k == nk - 1)
        def _():
            # Lane-parallel running max / argmax: pure VPU updates on
            # (tm, 128) sub-blocks of the logits tile.
            lane = lax.broadcasted_iota(jnp.int32, lmax_ref.shape, 1)
            base = j * tv
            for s in range(nsub):
                blk = acc_ref[:, s * 128:(s + 1) * 128]
                blk_col = base + (s * 128) + lane
                if mask_cols:
                    blk = jnp.where(blk_col < vocab, blk, -jnp.inf)
                # strict '>' keeps the first occurrence on ties (matches
                # jnp/torch argmax).  NB: NaN logits never win under '>'.
                better = blk > lmax_ref[...]
                larg_ref[...] = jnp.where(better, blk_col, larg_ref[...])
                lmax_ref[...] = jnp.where(better, blk, lmax_ref[...])

            @pl.when(j == nj - 1)
            def _():
                # single cross-lane reduction per row tile
                row_max = jnp.max(lmax_ref[...], axis=-1, keepdims=True)
                cand = jnp.where(lmax_ref[...] == row_max, larg_ref[...],
                                 jnp.iinfo(jnp.int32).max)
                idx_ref[...] = jnp.min(cand, axis=-1, keepdims=True)

    return kernel


# ---------------------------------------------------------------------------
# Wrapper
# ---------------------------------------------------------------------------
@functools.partial(jax.jit, static_argnames=("use_unembed_argmax", "tile_override"))
def unembedding_forward(x, unembedding_data, *, use_unembed_argmax,
                        tile_override=None):
    """x: [batch, seq, d_model]; unembedding_data: [d_model, vocab] (f32).

    Returns logits [batch, seq, vocab] (f32) or argmax ids [batch, seq] (i32).
    """
    batch, seq, d_model = x.shape
    d_model_w, vocab = unembedding_data.shape
    assert d_model == d_model_w
    M = batch * seq

    budget, vmem_cap = _vmem_info()
    if tile_override is not None:
        tm, tv, tk = tile_override
        used = 0
    else:
        tm, tv, tk, used = _choose_tiles(
            M, d_model, vocab,
            jnp.dtype(x.dtype).itemsize,
            jnp.dtype(unembedding_data.dtype).itemsize,
            budget)
    vmem_limit = int(min(vmem_cap, max(used + (8 << 20), 32 << 20)))

    x_flat = x.reshape(M, d_model)      # lane-dense [M, d_model] slab
    w = unembedding_data                # streamed as-is: no host-side padding

    gm = pl.cdiv(M, tm)
    gv = pl.cdiv(vocab, tv)
    gk = pl.cdiv(d_model, tk)

    if not use_unembed_argmax:
        # Choose the grid order that minimizes HBM re-streaming (only matters
        # when the contraction is un-tiled; with gk>1 both operands re-stream).
        if gk == 1:
            w_bytes = d_model * vocab * jnp.dtype(w.dtype).itemsize
            x_bytes = M * d_model * jnp.dtype(x.dtype).itemsize
            m_outer = w_bytes * (gm - 1) <= x_bytes * (gv - 1)
        else:
            m_outer = True
        if m_outer:
            grid = (gm, gv, gk)
            x_spec = pl.BlockSpec((tm, tk), lambda i, j, k: (i, k))
            w_spec = pl.BlockSpec((tk, tv), lambda i, j, k: (k, j))
            o_spec = pl.BlockSpec((tm, tv), lambda i, j, k: (i, j))
        else:
            grid = (gv, gm, gk)
            x_spec = pl.BlockSpec((tm, tk), lambda j, i, k: (i, k))
            w_spec = pl.BlockSpec((tk, tv), lambda j, i, k: (k, j))
            o_spec = pl.BlockSpec((tm, tv), lambda j, i, k: (i, j))

        out = pl.pallas_call(
            _unembed_logits_kernel,
            out_shape=jax.ShapeDtypeStruct((M, vocab), jnp.float32),
            grid=grid,
            in_specs=[x_spec, w_spec],
            out_specs=o_spec,
            scratch_shapes=[pltpu.VMEM((tm, tv), jnp.float32)],
            compiler_params=pltpu.CompilerParams(
                dimension_semantics=("parallel", "parallel", "arbitrary"),
                vmem_limit_bytes=vmem_limit,
            ),
        )(x_flat, w)
        return out.reshape(batch, seq, vocab)

    # Fused matmul + online argmax (int32 ids; torch returns int64).
    idx = pl.pallas_call(
        _make_unembed_argmax_kernel(vocab, tv),
        out_shape=jax.ShapeDtypeStruct((M, 1), jnp.int32),
        grid=(gm, gv, gk),
        in_specs=[
            pl.BlockSpec((tm, tk), lambda i, j, k: (i, k)),
            pl.BlockSpec((tk, tv), lambda i, j, k: (k, j)),
        ],
        out_specs=pl.BlockSpec((tm, 1), lambda i, j, k: (i, 0)),
        scratch_shapes=[
            pltpu.VMEM((tm, tv), jnp.float32),   # logits accumulator
            pltpu.VMEM((tm, 128), jnp.float32),  # per-lane running max
            pltpu.VMEM((tm, 128), jnp.int32),    # per-lane running column idx
        ],
        compiler_params=pltpu.CompilerParams(
            dimension_semantics=("parallel", "arbitrary", "arbitrary"),
            vmem_limit_bytes=vmem_limit,
        ),
    )(x_flat, w)
    return idx.reshape(batch, seq)


# ---------------------------------------------------------------------------
# Demo / self-check
# ---------------------------------------------------------------------------
if __name__ == "__main__":
    key = jax.random.PRNGKey(0)
    k1, k2, k3, k4, k5, k6 = jax.random.split(key, 6)
    HI = jax.lax.Precision.HIGHEST

    # Case 1: aligned shapes (decode-ish: single M tile, W streamed once).
    batch, seq, d_model, vocab = 2, 8, 32, 256
    x = jax.random.normal(k1, (batch, seq, d_model), dtype=jnp.float32)
    w = jax.random.normal(k2, (d_model, vocab), dtype=jnp.float32)

    logits = jax.block_until_ready(
        unembedding_forward(x, w, use_unembed_argmax=False))
    ref_logits = jnp.einsum("bsd,dv->bsv", x, w, precision=HI)
    assert logits.shape == (batch, seq, vocab)
    assert jnp.allclose(logits, ref_logits, atol=2e-3, rtol=2e-3)

    ids = jax.block_until_ready(
        unembedding_forward(x, w, use_unembed_argmax=True))
    assert ids.shape == (batch, seq)
    assert jnp.array_equal(ids, jnp.argmax(logits, axis=-1).astype(jnp.int32))

    # Case 2: ragged shapes (M % 8 != 0, vocab % 128 != 0): partial tiles +
    # in-kernel vocab masking, no host padding / slicing.
    b2, s2, d2, v2 = 1, 5, 32, 200
    x2 = jax.random.normal(k3, (b2, s2, d2), dtype=jnp.float32)
    w2 = jax.random.normal(k4, (d2, v2), dtype=jnp.float32)
    ref2 = jnp.einsum("bsd,dv->bsv", x2, w2, precision=HI)

    logits2 = jax.block_until_ready(
        unembedding_forward(x2, w2, use_unembed_argmax=False))
    assert logits2.shape == (b2, s2, v2)
    assert jnp.allclose(logits2, ref2, atol=2e-3, rtol=2e-3)
    ids2 = jax.block_until_ready(
        unembedding_forward(x2, w2, use_unembed_argmax=True))
    assert jnp.array_equal(ids2, jnp.argmax(logits2, axis=-1).astype(jnp.int32))

    # Case 3: forced small tiles — exercises the K (d_model) reduction axis
    # and multi-tile M / vocab accumulation in both kernels.
    b3, s3, d3, v3 = 2, 8, 256, 384
    x3 = jax.random.normal(k5, (b3, s3, d3), dtype=jnp.float32)
    w3 = jax.random.normal(k6, (d3, v3), dtype=jnp.float32)
    ref3 = jnp.einsum("bsd,dv->bsv", x3, w3, precision=HI)

    logits3 = jax.block_until_ready(
        unembedding_forward(x3, w3, use_unembed_argmax=False,
                            tile_override=(8, 128, 128)))
    assert jnp.allclose(logits3, ref3, atol=2e-3, rtol=2e-3)
    ids3 = jax.block_until_ready(
        unembedding_forward(x3, w3, use_unembed_argmax=True,
                            tile_override=(8, 128, 128)))
    assert jnp.array_equal(ids3, jnp.argmax(logits3, axis=-1).astype(jnp.int32))

    print("KERNEL_OK")
</pallas_src>

<mosaic_0001>
module attributes {stable_mosaic.version = 11 : i64} {
  func.func @_unembed_logits_kernel(%arg0: i32, %arg1: i32, %arg2: i32, %arg3: memref<16x32xf32, #tpu.memory_space<vmem>>, %arg4: memref<32x256xf32, #tpu.memory_space<vmem>>, %arg5: memref<16x256xf32, #tpu.memory_space<vmem>>, %arg6: memref<16x256xf32, #tpu.memory_space<vmem>>) attributes {dimension_semantics = [#tpu.dimension_semantics<parallel>, #tpu.dimension_semantics<parallel>, #tpu.dimension_semantics<arbitrary>], iteration_bounds = array<i64: 1, 1, 1>, scalar_prefetch = 0 : i64, scratch_operands = 1 : i64, tpu.core_type = #tpu.core_type<tc>, window_params = [{transform_indices = @transform_0, window_bounds = array<i64: 16, 32>}, {transform_indices = @transform_1, window_bounds = array<i64: 32, 256>}, {transform_indices = @transform_2, window_bounds = array<i64: 16, 256>}]} {
    %c0_i32 = arith.constant 0 : i32
    %0 = arith.cmpi eq, %arg2, %c0_i32 : i32
    %1 = arith.extui %0 : i1 to i32
    %c0_i32_0 = arith.constant 0 : i32
    %2 = arith.cmpi ne, %1, %c0_i32_0 : i32
    scf.if %2 {
      %cst_12 = arith.constant 0.000000e+00 : f32
      %11 = vector.broadcast %cst_12 : f32 to vector<16x256xf32>
      %c0_13 = arith.constant 0 : index
      %c0_14 = arith.constant 0 : index
      %12 = vector.load %arg6[%c0_13, %c0_14] : memref<16x256xf32, #tpu.memory_space<vmem>>, vector<16x256xf32>
      tpu.vector_store %arg6[%c0_13, %c0_14], %11 {strides = array<i32>} : memref<16x256xf32, #tpu.memory_space<vmem>>, vector<16x256xf32>,
    } else {
    }
    %c0 = arith.constant 0 : index
    %c0_1 = arith.constant 0 : index
    %3 = vector.load %arg6[%c0, %c0_1] : memref<16x256xf32, #tpu.memory_space<vmem>>, vector<16x256xf32>
    %c0_2 = arith.constant 0 : index
    %c0_3 = arith.constant 0 : index
    %4 = vector.load %arg3[%c0_2, %c0_3] : memref<16x32xf32, #tpu.memory_space<vmem>>, vector<16x32xf32>
    %c0_4 = arith.constant 0 : index
    %c0_5 = arith.constant 0 : index
    %5 = vector.load %arg4[%c0_4, %c0_5] : memref<32x256xf32, #tpu.memory_space<vmem>>, vector<32x256xf32>
    %cst = arith.constant dense<0.000000e+00> : vector<16x256xf32>
    %6 = tpu.matmul %4, %5, %cst {dimension_numbers = #tpu.dot_dimension_numbers<[1], [0], [0], [1], [0, 0, 1, 1], [], []>} : vector<16x32xf32>, vector<32x256xf32>, vector<16x256xf32> -> vector<16x256xf32>
    %7 = arith.addf %3, %6 : vector<16x256xf32>
    %c0_6 = arith.constant 0 : index
    %c0_7 = arith.constant 0 : index
    %8 = vector.load %arg6[%c0_6, %c0_7] : memref<16x256xf32, #tpu.memory_space<vmem>>, vector<16x256xf32>
    tpu.vector_store %arg6[%c0_6, %c0_7], %7 {strides = array<i32>} : memref<16x256xf32, #tpu.memory_space<vmem>>, vector<16x256xf32>,
    %c0_8 = arith.constant 0 : index
    %c0_9 = arith.constant 0 : index
    %9 = vector.load %arg6[%c0_8, %c0_9] : memref<16x256xf32, #tpu.memory_space<vmem>>, vector<16x256xf32>
    %c0_10 = arith.constant 0 : index
    %c0_11 = arith.constant 0 : index
    %10 = vector.load %arg5[%c0_10, %c0_11] : memref<16x256xf32, #tpu.memory_space<vmem>>, vector<16x256xf32>
    tpu.vector_store %arg5[%c0_10, %c0_11], %9 {strides = array<i32>} : memref<16x256xf32, #tpu.memory_space<vmem>>, vector<16x256xf32>,
    return
  }
  func.func @transform_0(%arg0: i32, %arg1: i32, %arg2: i32) -> (i32, i32) {
    %c0_i32 = arith.constant 0 : i32
    return %arg0, %arg2 : i32, i32
  }
  func.func @transform_1(%arg0: i32, %arg1: i32, %arg2: i32) -> (i32, i32) {
    %c0_i32 = arith.constant 0 : i32
    return %arg2, %arg1 : i32, i32
  }
  func.func @transform_2(%arg0: i32, %arg1: i32, %arg2: i32) -> (i32, i32) {
    %c0_i32 = arith.constant 0 : i32
    return %arg0, %arg1 : i32, i32
  }
}

</mosaic_0001>

<llo_original>
// kernel: unembedding_forward.1
$region0: #{unembedding_forward.1}
  #allocation0 [shape = 'u32[]', space=smem, size = 0x4, offset = 0x4, fixed_abs, tag = 'smem constant byte address 0x4 - core index']
  #allocation1 [shape = 'u32[144,128]{1,0:T(1,128)}', space=vmem, size = 0x12000, scoped, tag = 'internal scratch']
  #allocation2 [shape = 'f32[16,256]{1,0:T(8,128)}', space=vmem, size = 0x4000, scoped, tag = 'scratch operand']
  %s0 = inlined_call_operand.hbm [shape: f32[16,32], index: 0, kind: input, shape index: {}]
  %s1 = inlined_call_operand.hbm [shape: f32[32,256], index: 1, kind: input, shape index: {}]
  %s2 = inlined_call_operand.hbm [shape: f32[16,256], index: 2, kind: output, shape index: {}]
  %s3 = sld [smem:[#allocation0]]
  $region30: #{unembedding_forward.1} parent=0
    _
  %s5 = ssub.s32 1, %s3
  %s6 = scalar_select 0, %s5, %s3
  $region1: #{unembedding_forward.1} parent=0
    #allocation3 [shape = 'u8[8192]{0}', space=vmem, size = 0x2000, scoped, tag = 'input window, operand 0, single buffered']
    #allocation4 [shape = 's32[1]{0}', space=sflag, size = 0x4, scoped, tag = 'scoped memory for unembedding_forward.1']
    #allocation5 [shape = 's32[1]{0}', space=sflag, size = 0x4, scoped, tag = 'scoped memory for unembedding_forward.1']
    #allocation6 [shape = 'u8[32768]{0}', space=vmem, size = 0x8000, scoped, tag = 'input window, operand 1, single buffered']
    #allocation7 [shape = 's32[1]{0}', space=sflag, size = 0x4, scoped, tag = 'scoped memory for unembedding_forward.1']
    #allocation8 [shape = 'u8[16384]{0}', space=vmem, size = 0x4000, scoped, tag = 'output window, operand 0, single buffered']
    %7 = vsyncpa [#allocation4], 0
    %8 = vsyncpa [#allocation7], 0
    %9 = vsyncpa [#allocation5], 0
    // Predicated region
    $region2: #{unembedding_forward.1} parent=1 // pred_check
      _
    $region3: #{unembedding_forward.1} parent=1 // pred_check_branch
      %11 = sbr.rel (0) target = $region5
    $region4: #{unembedding_forward.1} parent=1 // pred_region
      %s13 = ssub.s32 256, 256
      %14 = vsyncadd [#allocation4], %s13
      %s15 = sshll.u32 [#allocation3], 4
      %s16 = int_to_ptr.vmem [resolvable:$true] %s15
      %21 = dma.hbm_to_vmem [thread:$0]  %s0, 256, %s16, [#allocation4], 128, 128, 8
    $region5: #{unembedding_forward.1} parent=1 // pred_fallthru
      _
    // Predicated region
    $region6: #{unembedding_forward.1} parent=1 // pred_check
      _
    $region7: #{unembedding_forward.1} parent=1 // pred_check_branch
      %23 = sbr.rel (0) target = $region9
    $region8: #{unembedding_forward.1} parent=1 // pred_region
      %s25 = ssub.s32 1024, 1024
      %26 = vsyncadd [#allocation7], %s25
      %s27 = sshll.u32 [#allocation6], 4
      %s28 = int_to_ptr.vmem [resolvable:$true] %s27
      %33 = dma.hbm_to_vmem [thread:$0]  %s1, 1024, %s28, [#allocation7], 256, 256, 16
    $region9: #{unembedding_forward.1} parent=1 // pred_fallthru
      _
    // Predicated region
    $region10: #{unembedding_forward.1} parent=1 // pred_check
      _
    $region11: #{unembedding_forward.1} parent=1 // pred_check_branch
      %35 = sbr.rel (0) target = $region13
    $region12: #{unembedding_forward.1} parent=1 // pred_region
      %36 = dma.done [#allocation4], 256
    $region13: #{unembedding_forward.1} parent=1 // pred_fallthru
      _
    // Predicated region
    $region14: #{unembedding_forward.1} parent=1 // pred_check
      _
    $region15: #{unembedding_forward.1} parent=1 // pred_check_branch
      %38 = sbr.rel (0) target = $region17
    $region16: #{unembedding_forward.1} parent=1 // pred_region
      %39 = dma.done [#allocation7], 1024
    $region17: #{unembedding_forward.1} parent=1 // pred_fallthru
      _
    %p40 = scmp.eq.s32.totalorder 0, 0
    // Predicated region
    $region18: #{unembedding_forward.1} parent=1 // pred_check
      %p41 = pneg %p40
    $region19: #{unembedding_forward.1} parent=1 // pred_check_branch
      %43 = sbr.rel (%p41) target = $region21
    $region20: #{unembedding_forward.1} parent=1 // pred_region
      %44 = vst [vmem:[#allocation2] sm:$0xff] 0.0
      %45 = vst [vmem:[#allocation2 + $0x8] sm:$0xff] 0.0
      %46 = vst [vmem:[#allocation2 + $0x10] sm:$0xff] 0.0
      %47 = vst [vmem:[#allocation2 + $0x18] sm:$0xff] 0.0
    $region21: #{unembedding_forward.1} parent=1 // pred_fallthru
      _
    %v48 = vld [vmem:[#allocation2] sm:$0xff]
    %v49 = vld [vmem:[#allocation2 + $0x8] sm:$0xff]
    %v50 = vld [vmem:[#allocation2 + $0x10] sm:$0xff]
    %v51 = vld [vmem:[#allocation2 + $0x18] sm:$0xff]
    %v52 = vld [vmem:[#allocation3] sm:$0xff]
    %v53 = vld [vmem:[#allocation3 + $0x8] sm:$0xff]
    %v54 = vld [vmem:[#allocation6] sm:$0xff]
    %v55 = vld [vmem:[#allocation6 + $0x8] sm:$0xff]
    %v56 = vld [vmem:[#allocation6 + $0x10] sm:$0xff]
    %v57 = vld [vmem:[#allocation6 + $0x18] sm:$0xff]
    %v58 = vld [vmem:[#allocation6 + $0x20] sm:$0xff]
    %v59 = vld [vmem:[#allocation6 + $0x28] sm:$0xff]
    %v60 = vld [vmem:[#allocation6 + $0x30] sm:$0xff]
    %v61 = vld [vmem:[#allocation6 + $0x38] sm:$0xff]
    %vm62 = vcmask 261120
    %v64 = vsel %vm62, %v52, 0
    %v67 = vsel %vm62, %v53, 0
    %69 = vmatprep.subr.mxu0 %v55
    %70 = vmatpush1.msra.mxu0 %v54
    %71 = vmatprep.subr.mxu0 %v57
    %72 = vmatpush1.msra.mxu0 %v56
    %73 = vmatprep.subr.mxu0 %v59
    %74 = vmatpush1.msra.mxu0 %v58
    %75 = vmatprep.subr.mxu0 %v61
    %76 = vmatpush1.msra.mxu0 %v60
    %77 = vmatprep.subr.mxu0 0.0
    %78 = vmatpush1.msra.mxu0 0.0
    %79 = vmatprep.subr.mxu0 0.0
    %80 = vmatpush1.msra.mxu0 0.0
    %81 = vmatprep.subr.mxu0 0.0
    %82 = vmatpush1.msra.mxu0 0.0
    %83 = vmatprep.subr.mxu0 0.0
    %84 = vmatpush1.msra.mxu0 0.0
    %85 = vmatprep.subr.mxu0 0.0
    %86 = vmatpush1.msra.mxu0 0.0
    %87 = vmatprep.subr.mxu0 0.0
    %88 = vmatpush1.msra.mxu0 0.0
    %89 = vmatprep.subr.mxu0 0.0
    %90 = vmatpush1.msra.mxu0 0.0
    %91 = vmatprep.subr.mxu0 0.0
    %92 = vmatpush1.msra.mxu0 0.0
    %93 = vmatprep.subr.mxu0 0.0
    %94 = vmatpush1.msra.mxu0 0.0
    %95 = vmatprep.subr.mxu0 0.0
    %96 = vmatpush1.msra.mxu0 0.0
    %97 = vmatprep.subr.mxu0 0.0
    %98 = vmatpush1.msra.mxu0 0.0
    %99 = vmatprep.subr.mxu0 0.0
    %100 = vmatpush1.msra.mxu0 0.0
    %101 = vmatprep.subr.mxu0 0.0
    %102 = vmatpush1.msra.mxu0 0.0
    %103 = vmatprep.subr.mxu0 0.0
    %104 = vmatpush1.msra.mxu0 0.0
    %105 = vmatprep.subr.mxu0 0.0
    %106 = vmatpush1.msra.mxu0 0.0
    %107 = vmatprep.subr.mxu0 0.0
    %108 = vmatpush1.msra.mxu0 0.0
    %109 = vmatprep.subr.mxu0 0.0
    %110 = vmatpush1.msra.mxu0 0.0
    %111 = vmatprep.subr.mxu0 0.0
    %112 = vmatpush1.msra.mxu0 0.0
    %113 = vmatprep.subr.mxu0 0.0
    %114 = vmatpush1.msra.mxu0 0.0
    %115 = vmatprep.subr.mxu0 0.0
    %116 = vmatpush1.msra.mxu0 0.0
    %117 = vmatprep.subr.mxu0 0.0
    %118 = vmatpush1.msra.mxu0 0.0
    %119 = vmatprep.subr.mxu0 0.0
    %120 = vmatpush1.msra.mxu0 0.0
    %121 = vmatprep.subr.mxu0 0.0
    %122 = vmatpush1.msra.mxu0 0.0
    %123 = vmatprep.subr.mxu0 0.0
    %124 = vmatpush1.msra.mxu0 0.0
    %125 = vmatprep.subr.mxu0 0.0
    %126 = vmatpush1.msra.mxu0 0.0
    %127 = vmatprep.subr.mxu0 0.0
    %128 = vmatpush1.msra.mxu0 0.0
    %129 = vmatprep.subr.mxu0 0.0
    %130 = vmatpush1.msra.mxu0 0.0
    %131 = vmatprep.subr.mxu0 0.0
    %132 = vmatpush1.msra.mxu0 0.0
    %133 = vmatprep.mubr.f32.mxu0 0.0
    %134 = vmatmul.mubr.f32.gmra.mrb[0].mxu0 %v64
    %v135 = vpop.f32.mrb[0].mxu0
    %v136 = vadd.f32 0.0, %v135
    %v137 = vpop.f32.mrb[0].mxu0
    %v138 = vadd.f32 0.0, %v137
    %139 = vmatprep.mubr.f32.mxu0 0.0
    %140 = vmatmul.mubr.f32.gmra.mrb[0].mxu0 %v67
    %v141 = vpop.f32.mrb[0].mxu0
    %v142 = vadd.f32 0.0, %v141
    %v143 = vpop.f32.mrb[0].mxu0
    %v144 = vadd.f32 0.0, %v143
    %145 = vdwg.mxu0
    %v146 = vadd.f32 %v48, %v136
    %v147 = vadd.f32 %v49, %v138
    %v148 = vadd.f32 %v50, %v142
    %v149 = vadd.f32 %v51, %v144
    %150 = vst [vmem:[#allocation2] sm:$0xff] %v146
    %151 = vst [vmem:[#allocation2 + $0x8] sm:$0xff] %v147
    %152 = vst [vmem:[#allocation2 + $0x10] sm:$0xff] %v148
    %153 = vst [vmem:[#allocation2 + $0x18] sm:$0xff] %v149
    %v154 = vld [vmem:[#allocation2] sm:$0xff]
    %v155 = vld [vmem:[#allocation2 + $0x8] sm:$0xff]
    %v156 = vld [vmem:[#allocation2 + $0x10] sm:$0xff]
    %v157 = vld [vmem:[#allocation2 + $0x18] sm:$0xff]
    %158 = vst [vmem:[#allocation8] sm:$0xff] %v154
    %159 = vst [vmem:[#allocation8 + $0x8] sm:$0xff] %v155
    %160 = vst [vmem:[#allocation8 + $0x10] sm:$0xff] %v156
    %161 = vst [vmem:[#allocation8 + $0x18] sm:$0xff] %v157
    // Predicated region
    $region22: #{unembedding_forward.1} parent=1 // pred_check
      _
    $region23: #{unembedding_forward.1} parent=1 // pred_check_branch
      %163 = sbr.rel (0) target = $region25
    $region24: #{unembedding_forward.1} parent=1 // pred_region
      %s165 = ssub.s32 512, 512
      %166 = vsyncadd [#allocation5], %s165
      %s167 = sshll.u32 [#allocation8], 4
      %s168 = int_to_ptr.vmem [resolvable:$true] %s167
      %173 = dma.vmem_to_hbm [thread:$0]  %s168, 512, %s2, [#allocation5], 256, 256, 16
    $region25: #{unembedding_forward.1} parent=1 // pred_fallthru
      _
    // Predicated region
    $region26: #{unembedding_forward.1} parent=1 // pred_check
      _
    $region27: #{unembedding_forward.1} parent=1 // pred_check_branch
      %175 = sbr.rel (0) target = $region29
    $region28: #{unembedding_forward.1} parent=1 // pred_region
      %176 = dma.done [#allocation5], 512
    $region29: #{unembedding_forward.1} parent=1 // pred_fallthru
      _
    %177 = vsyncpa [#allocation4], 1
    %178 = vsyncpa [#allocation7], 1
    %179 = vsyncpa [#allocation5], 1

</llo_original>
